<compile_context>
chip_gen: v5e
topology: v5e:2x2
jax: 0.10.0
libtpu: 0.0.40
codegen_flags: <defaults>
</compile_context>

<pallas_src>
import jax
import jax.numpy as jnp
from jax.experimental import pallas as pl

MLP_DIMS = (2, 300, 150, 75, 30, 1)


# ----------------------------------------------------------------------------
# Kernel A: mynet (fused MLP)
# ----------------------------------------------------------------------------
def _mlp_kernel(x_ref, w1_ref, b1_ref, w2_ref, b2_ref, w3_ref, b3_ref,
                w4_ref, b4_ref, w5t_ref, b5_ref, h_ref):
    x = x_ref[...]                                        # (n, 2)
    w1 = w1_ref[...]                                      # (2, 300)
    # layer 1: contraction dim is only 2 -> VPU broadcast-MAC, no MXU pass
    h = jnp.tanh(x[:, 0:1] * w1[0:1, :] + x[:, 1:2] * w1[1:2, :] + b1_ref[...])
    h = jnp.tanh(jnp.dot(h, w2_ref[...], preferred_element_type=jnp.float32)
                 + b2_ref[...])
    h = jnp.tanh(jnp.dot(h, w3_ref[...], preferred_element_type=jnp.float32)
                 + b3_ref[...])
    h = jnp.tanh(jnp.dot(h, w4_ref[...], preferred_element_type=jnp.float32)
                 + b4_ref[...])
    # layer 5: output width 1 -> lane-reduce instead of a 1-lane MXU matmul
    h_ref[...] = jnp.sum(h * w5t_ref[...], axis=-1, keepdims=True) + b5_ref[...]


def mlp_forward(params, x):
    (w1, b1), (w2, b2), (w3, b3), (w4, b4), (w5, b5) = params["mlp"]
    n = x.shape[0]
    return pl.pallas_call(
        _mlp_kernel,
        out_shape=jax.ShapeDtypeStruct((n, 1), jnp.float32),
    )(x, w1, b1.reshape(1, -1), w2, b2.reshape(1, -1), w3, b3.reshape(1, -1),
      w4, b4.reshape(1, -1), w5.reshape(1, -1), b5.reshape(1, 1))


# ----------------------------------------------------------------------------
# Kernel B: fused Gram matrix + projected targets
#   P = [phi | y | 0-pad] (N_pad, 128k)  ->  G = P^T P,  A = G[:M,:M],
#   b = G[:M, M:M+1].  Single grid step, single lane-dense MXU output.
# ----------------------------------------------------------------------------
def _gram_kernel(p_ref, g_ref):
    p = p_ref[...]
    g_ref[...] = jax.lax.dot_general(
        p, p, (((0,), (0,)), ((), ())), preferred_element_type=jnp.float32)


def gram(phi, y):
    n, m = phi.shape
    k = pl.cdiv(m + 1, 128) * 128           # lane-dense, unmasked output tile
    n_pad = pl.cdiv(n, 8) * 8               # zero rows do not change P^T P
    p = jnp.zeros((n_pad, k), jnp.float32)
    p = p.at[:n, :m].set(phi)
    p = p.at[:n, m:m + 1].set(y)
    g = pl.pallas_call(
        _gram_kernel,
        out_shape=jax.ShapeDtypeStruct((k, k), jnp.float32),
    )(p)
    return g[:m, :m], g[:m, m:m + 1]


# ----------------------------------------------------------------------------
# Kernel C: posterior prediction at the warped test points (lane-dense)
#   pst[j,t]  = sin(omega_j * (h2_t + L))                      (M, NT_pad)
#   vt        = [zinv/L ; alpha^T/sqrt(L)] @ pst               (M+1, NT_pad)
#   mean[t]   = vt[M, t]
#   var[t]    = sum_j vt[j, t] * pst[j, t]   ( = phi*_t Z^-1 phi*_t^T )
# ----------------------------------------------------------------------------
def _predict_kernel(h2_ref, omega_ref, zext_ref, out_ref):
    pst = jnp.sin(omega_ref[...] * h2_ref[...])           # (M, NT_pad), EUP/VPU
    m = omega_ref.shape[0]
    vt = jnp.dot(zext_ref[...], pst, preferred_element_type=jnp.float32)
    out_ref[0:1, :] = vt[m:m + 1, :]                                    # mean
    out_ref[1:2, :] = jnp.sum(vt[:m, :] * pst, axis=0, keepdims=True)   # var


def predict(h2, sq_lambda, L, zinv, alpha):
    nt = h2.shape[0]
    m = zinv.shape[0]
    ntp = pl.cdiv(nt, 128) * 128            # test axis padded to full lanes
    L0 = jnp.asarray(L, jnp.float32).reshape(-1)[0]
    # warped test points on the lane axis, pre-shifted by +L
    h2_row = jnp.zeros((1, ntp), jnp.float32).at[0, :nt].set(h2[:, 0] + L0)
    omega = sq_lambda.reshape(m, 1).astype(jnp.float32)
    # fuse alpha and the 1/sqrt(L) basis scale into one MXU operand
    mp = pl.cdiv(m + 1, 8) * 8
    zext = jnp.zeros((mp, m), jnp.float32)
    zext = zext.at[:m, :].set(zinv / L0)
    zext = zext.at[m, :].set(alpha[:, 0] / jnp.sqrt(L0))
    out = pl.pallas_call(
        _predict_kernel,
        out_shape=jax.ShapeDtypeStruct((2, ntp), jnp.float32),
    )(h2_row, omega, zext)
    mean = out[0, :nt].reshape(nt, 1)
    var = out[1, :nt].reshape(nt, 1)
    return mean, var


# ----------------------------------------------------------------------------
# Glue: SE spectral density + forward pass mirroring gpnet2_1_7.forward
# ----------------------------------------------------------------------------
def se_spectral_density(sigma_f, lengthscale, sq_lambda):
    d = sq_lambda.shape[1]
    return (sigma_f ** 2 * (2.0 * jnp.pi) ** (d / 2.0) * jnp.prod(lengthscale)
            * jnp.exp(-0.5 * jnp.sum((lengthscale[None, :] ** 2)
                                     * sq_lambda ** 2, axis=1)))


def init_params(key):
    keys = jax.random.split(key, 2 * (len(MLP_DIMS) - 1))
    mlp = []
    for i in range(len(MLP_DIMS) - 1):
        fan_in = MLP_DIMS[i]
        w = (jax.random.normal(keys[2 * i], (MLP_DIMS[i], MLP_DIMS[i + 1]),
                               jnp.float32) / jnp.sqrt(fan_in))
        b = 0.1 * jax.random.normal(keys[2 * i + 1], (MLP_DIMS[i + 1],),
                                    jnp.float32)
        mlp.append((w, b))
    # GP_new(sigma_f=1, lengthscale=[1], sigma_n=1) -> log-parameters = 0
    return {"mlp": mlp,
            "log_sigma_f": jnp.float32(0.0),
            "log_lengthscale": jnp.zeros((1,), jnp.float32),
            "log_sigma_n": jnp.float32(0.0)}


def gpnet2_1_7_forward(params, x_train=None, y_train=None, phi=None,
                       sq_lambda=None, L=None, x_test=None):
    h = mlp_forward(params, x_train) if x_train is not None else None
    h2 = mlp_forward(params, x_test) if x_test is not None else None
    if y_train is None:
        return h                                          # torch: out = h

    sigma_f = jnp.exp(params["log_sigma_f"])
    lengthscale = jnp.exp(params["log_lengthscale"])
    sigma_n = jnp.exp(params["log_sigma_n"])

    A, b = gram(phi, y_train)                             # Pallas kernel B
    S = se_spectral_density(sigma_f, lengthscale, sq_lambda)
    Z = A + (sigma_n ** 2) * jnp.diag(1.0 / S)
    # TODO(synk): dense M x M Cholesky solve has no clean Pallas TPU
    # equivalent; done with jnp.linalg in glue.
    zinv = jnp.linalg.inv(Z)
    alpha = zinv @ b

    if h2 is None:
        # TODO(synk): GP_new training branch (neg. log marginal likelihood,
        # needs logdet) not implemented; returning the dual weights instead.
        return alpha

    mean, var_raw = predict(h2, sq_lambda, L, zinv, alpha)  # Pallas kernel C
    cov_f = (sigma_n ** 2) * var_raw
    return mean, cov_f


# ----------------------------------------------------------------------------
# Pure-JAX reference and helpers
# ----------------------------------------------------------------------------
def basis_features(x, sq_lambda, L):
    arg = (x[:, None, :] + L[None, None, :]) * sq_lambda[None, :, :]
    return jnp.prod(jnp.sin(arg) / jnp.sqrt(L)[None, None, :], axis=-1)


def mlp_reference(params, x):
    hp = jax.lax.Precision.HIGHEST
    h = x
    nl = len(params["mlp"])
    for i, (w, b) in enumerate(params["mlp"]):
        h = jnp.dot(h, w, precision=hp) + b
        if i < nl - 1:
            h = jnp.tanh(h)
    return h


def reference_forward(params, y, phi, sq_lambda, L_vec, x_test):
    hp = jax.lax.Precision.HIGHEST
    sigma_f = jnp.exp(params["log_sigma_f"])
    lengthscale = jnp.exp(params["log_lengthscale"])
    sigma_n = jnp.exp(params["log_sigma_n"])
    h2 = mlp_reference(params, x_test)
    A = jnp.dot(phi.T, phi, precision=hp)
    b = jnp.dot(phi.T, y, precision=hp)
    S = se_spectral_density(sigma_f, lengthscale, sq_lambda)
    Z = A + sigma_n ** 2 * jnp.diag(1.0 / S)
    zinv = jnp.linalg.inv(Z)
    alpha = jnp.dot(zinv, b, precision=hp)
    phi_star = basis_features(h2, sq_lambda, L_vec)
    mean = jnp.dot(phi_star, alpha, precision=hp)
    cov = sigma_n ** 2 * jnp.sum(jnp.dot(phi_star, zinv, precision=hp)
                                 * phi_star, axis=1, keepdims=True)
    return mean, cov


if __name__ == "__main__":
    key = jax.random.PRNGKey(0)
    kp, k1, k2, k3 = jax.random.split(key, 4)

    n_train, n_test, m_basis = 64, 64, 64
    L_dom = 32.0
    L_vec = jnp.array([L_dom], dtype=jnp.float32)

    params = init_params(kp)

    x_train = jax.random.uniform(k1, (n_train, 2), minval=-1.0, maxval=1.0,
                                 dtype=jnp.float32)
    x_test = jax.random.uniform(k2, (n_test, 2), minval=-1.0, maxval=1.0,
                                dtype=jnp.float32)
    y_train = (jnp.sin(3.0 * x_train[:, :1]) * jnp.cos(2.0 * x_train[:, 1:2])
               + 0.05 * jax.random.normal(k3, (n_train, 1), dtype=jnp.float32))

    # Hilbert-space basis frequencies for the 1-D warped feature space.
    idx = jnp.arange(1, m_basis + 1, dtype=jnp.float32).reshape(m_basis, 1)
    sq_lambda = jnp.pi * idx / (2.0 * L_dom)              # (M, 1)

    # Exercise the passthrough branch (y_train None -> h = mynet(x_train)),
    # and use it to build phi the way the original training script does.
    h_train = gpnet2_1_7_forward(params, x_train=x_train)
    jax.block_until_ready(h_train)
    phi = basis_features(h_train, sq_lambda, L_vec)       # (N, M) forward input

    mean, cov_f = gpnet2_1_7_forward(params, x_train=x_train, y_train=y_train,
                                     phi=phi, sq_lambda=sq_lambda, L=L_vec,
                                     x_test=x_test)
    jax.block_until_ready((mean, cov_f))

    h_ref = mlp_reference(params, x_train)
    mean_ref, cov_ref = reference_forward(params, y_train, phi, sq_lambda,
                                          L_vec, x_test)

    assert h_train.shape == (n_train, 1)
    assert mean.shape == (n_test, 1) and cov_f.shape == (n_test, 1)
    assert jnp.allclose(h_train, h_ref, rtol=2e-2, atol=1e-2), "mynet mismatch"
    assert jnp.allclose(mean, mean_ref, rtol=5e-2, atol=1e-2), "mean mismatch"
    assert jnp.allclose(cov_f, cov_ref, rtol=5e-2, atol=1e-2), "cov mismatch"

    print("KERNEL_OK")
</pallas_src>

<mosaic_0001>
module attributes {stable_mosaic.version = 11 : i64} {
  func.func @_mlp_kernel(%arg0: memref<64x2xf32, #tpu.memory_space<vmem>>, %arg1: memref<2x300xf32, #tpu.memory_space<vmem>>, %arg2: memref<1x300xf32, #tpu.memory_space<vmem>>, %arg3: memref<300x150xf32, #tpu.memory_space<vmem>>, %arg4: memref<1x150xf32, #tpu.memory_space<vmem>>, %arg5: memref<150x75xf32, #tpu.memory_space<vmem>>, %arg6: memref<1x75xf32, #tpu.memory_space<vmem>>, %arg7: memref<75x30xf32, #tpu.memory_space<vmem>>, %arg8: memref<1x30xf32, #tpu.memory_space<vmem>>, %arg9: memref<1x30xf32, #tpu.memory_space<vmem>>, %arg10: memref<1x1xf32, #tpu.memory_space<vmem>>, %arg11: memref<64x1xf32, #tpu.memory_space<vmem>>) attributes {dimension_semantics = [], scalar_prefetch = 0 : i64, scratch_operands = 0 : i64, tpu.core_type = #tpu.core_type<tc>} {
    %c0 = arith.constant 0 : index
    %c0_0 = arith.constant 0 : index
    %0 = vector.load %arg0[%c0, %c0_0] : memref<64x2xf32, #tpu.memory_space<vmem>>, vector<64x2xf32>
    %c0_1 = arith.constant 0 : index
    %c0_2 = arith.constant 0 : index
    %1 = vector.load %arg1[%c0_1, %c0_2] : memref<2x300xf32, #tpu.memory_space<vmem>>, vector<2x300xf32>
    %2 = vector.extract_strided_slice %0 {offsets = [0, 0], sizes = [64, 1], strides = [1, 1]} : vector<64x2xf32> to vector<64x1xf32>
    %3 = vector.extract_strided_slice %1 {offsets = [0, 0], sizes = [1, 300], strides = [1, 1]} : vector<2x300xf32> to vector<1x300xf32>
    %4 = vector.broadcast %2 : vector<64x1xf32> to vector<64x300xf32>
    %5 = vector.broadcast %3 : vector<1x300xf32> to vector<64x300xf32>
    %6 = arith.mulf %4, %5 : vector<64x300xf32>
    %7 = vector.extract_strided_slice %0 {offsets = [0, 1], sizes = [64, 1], strides = [1, 1]} : vector<64x2xf32> to vector<64x1xf32>
    %8 = vector.extract_strided_slice %1 {offsets = [1, 0], sizes = [1, 300], strides = [1, 1]} : vector<2x300xf32> to vector<1x300xf32>
    %9 = vector.broadcast %7 : vector<64x1xf32> to vector<64x300xf32>
    %10 = vector.broadcast %8 : vector<1x300xf32> to vector<64x300xf32>
    %11 = arith.mulf %9, %10 : vector<64x300xf32>
    %12 = arith.addf %6, %11 : vector<64x300xf32>
    %c0_3 = arith.constant 0 : index
    %c0_4 = arith.constant 0 : index
    %13 = vector.load %arg2[%c0_3, %c0_4] : memref<1x300xf32, #tpu.memory_space<vmem>>, vector<1x300xf32>
    %14 = vector.broadcast %13 : vector<1x300xf32> to vector<64x300xf32>
    %15 = arith.addf %12, %14 : vector<64x300xf32>
    %16 = math.tanh %15 : vector<64x300xf32>
    %c0_5 = arith.constant 0 : index
    %c0_6 = arith.constant 0 : index
    %17 = vector.load %arg3[%c0_5, %c0_6] : memref<300x150xf32, #tpu.memory_space<vmem>>, vector<300x150xf32>
    %cst = arith.constant dense<0.000000e+00> : vector<64x150xf32>
    %18 = tpu.matmul %16, %17, %cst {dimension_numbers = #tpu.dot_dimension_numbers<[1], [0], [0], [1], [0, 0, 1, 1], [], []>} : vector<64x300xf32>, vector<300x150xf32>, vector<64x150xf32> -> vector<64x150xf32>
    %c0_7 = arith.constant 0 : index
    %c0_8 = arith.constant 0 : index
    %19 = vector.load %arg4[%c0_7, %c0_8] : memref<1x150xf32, #tpu.memory_space<vmem>>, vector<1x150xf32>
    %20 = vector.broadcast %19 : vector<1x150xf32> to vector<64x150xf32>
    %21 = arith.addf %18, %20 : vector<64x150xf32>
    %22 = math.tanh %21 : vector<64x150xf32>
    %c0_9 = arith.constant 0 : index
    %c0_10 = arith.constant 0 : index
    %23 = vector.load %arg5[%c0_9, %c0_10] : memref<150x75xf32, #tpu.memory_space<vmem>>, vector<150x75xf32>
    %cst_11 = arith.constant dense<0.000000e+00> : vector<64x75xf32>
    %24 = tpu.matmul %22, %23, %cst_11 {dimension_numbers = #tpu.dot_dimension_numbers<[1], [0], [0], [1], [0, 0, 1, 1], [], []>} : vector<64x150xf32>, vector<150x75xf32>, vector<64x75xf32> -> vector<64x75xf32>
    %c0_12 = arith.constant 0 : index
    %c0_13 = arith.constant 0 : index
    %25 = vector.load %arg6[%c0_12, %c0_13] : memref<1x75xf32, #tpu.memory_space<vmem>>, vector<1x75xf32>
    %26 = vector.broadcast %25 : vector<1x75xf32> to vector<64x75xf32>
    %27 = arith.addf %24, %26 : vector<64x75xf32>
    %28 = math.tanh %27 : vector<64x75xf32>
    %c0_14 = arith.constant 0 : index
    %c0_15 = arith.constant 0 : index
    %29 = vector.load %arg7[%c0_14, %c0_15] : memref<75x30xf32, #tpu.memory_space<vmem>>, vector<75x30xf32>
    %cst_16 = arith.constant dense<0.000000e+00> : vector<64x30xf32>
    %30 = tpu.matmul %28, %29, %cst_16 {dimension_numbers = #tpu.dot_dimension_numbers<[1], [0], [0], [1], [0, 0, 1, 1], [], []>} : vector<64x75xf32>, vector<75x30xf32>, vector<64x30xf32> -> vector<64x30xf32>
    %c0_17 = arith.constant 0 : index
    %c0_18 = arith.constant 0 : index
    %31 = vector.load %arg8[%c0_17, %c0_18] : memref<1x30xf32, #tpu.memory_space<vmem>>, vector<1x30xf32>
    %32 = vector.broadcast %31 : vector<1x30xf32> to vector<64x30xf32>
    %33 = arith.addf %30, %32 : vector<64x30xf32>
    %34 = math.tanh %33 : vector<64x30xf32>
    %c0_19 = arith.constant 0 : index
    %c0_20 = arith.constant 0 : index
    %35 = vector.load %arg9[%c0_19, %c0_20] : memref<1x30xf32, #tpu.memory_space<vmem>>, vector<1x30xf32>
    %36 = vector.broadcast %35 : vector<1x30xf32> to vector<64x30xf32>
    %37 = arith.mulf %34, %36 : vector<64x30xf32>
    %cst_21 = arith.constant dense<0.000000e+00> : vector<64xf32>
    %38 = vector.multi_reduction <add>, %37, %cst_21 [1] : vector<64x30xf32> to vector<64xf32>
    %39 = vector.shape_cast %38 : vector<64xf32> to vector<64x1xf32>
    %c0_22 = arith.constant 0 : index
    %c0_23 = arith.constant 0 : index
    %40 = vector.load %arg10[%c0_22, %c0_23] : memref<1x1xf32, #tpu.memory_space<vmem>>, vector<1x1xf32>
    %41 = vector.broadcast %40 : vector<1x1xf32> to vector<64x1xf32>
    %42 = arith.addf %39, %41 : vector<64x1xf32>
    %c0_24 = arith.constant 0 : index
    %c0_25 = arith.constant 0 : index
    %43 = vector.load %arg11[%c0_24, %c0_25] : memref<64x1xf32, #tpu.memory_space<vmem>>, vector<64x1xf32>
    tpu.vector_store %arg11[%c0_24, %c0_25], %42 {strides = array<i32>} : memref<64x1xf32, #tpu.memory_space<vmem>>, vector<64x1xf32>,
    return
  }
}

</mosaic_0001>

<llo_original>
// kernel: tpu_custom_call.1
$region0: #{tpu_custom_call.1}
  #allocation0 [shape = 'u32[]', space=smem, size = 0x4, offset = 0x4, fixed_abs, tag = 'smem constant byte address 0x4 - core index']
  #allocation1 [shape = 'u32[72,128]{1,0:T(1,128)}', space=vmem, size = 0x9000, scoped, tag = 'internal scratch']
  #allocation2 [shape = 'f32[1,1]{1,0:T(1,128)S(1)}', space=vmem, size = 0x200, scoped, tag = 'scoped memory for tpu_custom_call.1']
  %s0 = inlined_call_operand.vmem [shape: f32[64,2], index: 0, kind: input, shape index: {}]
  %s1 = inlined_call_operand.vmem [shape: f32[2,300], index: 1, kind: input, shape index: {}]
  %s2 = inlined_call_operand.vmem [shape: f32[1,300], index: 2, kind: input, shape index: {}]
  %s3 = inlined_call_operand.vmem [shape: f32[300,150], index: 3, kind: input, shape index: {}]
  %s4 = inlined_call_operand.vmem [shape: f32[1,150], index: 4, kind: input, shape index: {}]
  %s5 = inlined_call_operand.vmem [shape: f32[150,75], index: 5, kind: input, shape index: {}]
  %s6 = inlined_call_operand.vmem [shape: f32[1,75], index: 6, kind: input, shape index: {}]
  %s7 = inlined_call_operand.vmem [shape: f32[75,30], index: 7, kind: input, shape index: {}]
  %s8 = inlined_call_operand.vmem [shape: f32[1,30], index: 8, kind: input, shape index: {}]
  %s9 = inlined_call_operand.vmem [shape: f32[1,30], index: 9, kind: input, shape index: {}]
  %s10 = inlined_call_operand.<no memory space> [shape: f32[1,1], index: 10, kind: input, shape index: {}]
  %s11 = inlined_call_operand.vmem [shape: f32[64,1], index: 11, kind: output, shape index: {}]
  %s12 = sld [smem:[#allocation0]]
  $region54: #{tpu_custom_call.1} parent=0
    _
  %s14 = ssub.s32 1, %s12
  %s15 = scalar_select 0, %s14, %s12
  %v16 = vstv %s10
  %17 = vst [vmem:[#allocation2] sm:$0x1] %v16
  // Predicated region
  $region2: #{tpu_custom_call.1} parent=0 // pred_check
    _
  $region3: #{tpu_custom_call.1} parent=0 // pred_check_branch
    %19 = sbr.rel (0) target = $region5
  $region4: #{tpu_custom_call.1} parent=0 // pred_region
    _
  $region5: #{tpu_custom_call.1} parent=0 // pred_fallthru
    _
  // Predicated region
  $region6: #{tpu_custom_call.1} parent=0 // pred_check
    _
  $region7: #{tpu_custom_call.1} parent=0 // pred_check_branch
    %21 = sbr.rel (0) target = $region9
  $region8: #{tpu_custom_call.1} parent=0 // pred_region
    _
  $region9: #{tpu_custom_call.1} parent=0 // pred_fallthru
    _
  // Predicated region
  $region10: #{tpu_custom_call.1} parent=0 // pred_check
    _
  $region11: #{tpu_custom_call.1} parent=0 // pred_check_branch
    %23 = sbr.rel (0) target = $region13
  $region12: #{tpu_custom_call.1} parent=0 // pred_region
    _
  $region13: #{tpu_custom_call.1} parent=0 // pred_fallthru
    _
  // Predicated region
  $region14: #{tpu_custom_call.1} parent=0 // pred_check
    _
  $region15: #{tpu_custom_call.1} parent=0 // pred_check_branch
    %25 = sbr.rel (0) target = $region17
  $region16: #{tpu_custom_call.1} parent=0 // pred_region
    _
  $region17: #{tpu_custom_call.1} parent=0 // pred_fallthru
    _
  // Predicated region
  $region18: #{tpu_custom_call.1} parent=0 // pred_check
    _
  $region19: #{tpu_custom_call.1} parent=0 // pred_check_branch
    %27 = sbr.rel (0) target = $region21
  $region20: #{tpu_custom_call.1} parent=0 // pred_region
    _
  $region21: #{tpu_custom_call.1} parent=0 // pred_fallthru
    _
  // Predicated region
  $region22: #{tpu_custom_call.1} parent=0 // pred_check
    _
  $region23: #{tpu_custom_call.1} parent=0 // pred_check_branch
    %29 = sbr.rel (0) target = $region25
  $region24: #{tpu_custom_call.1} parent=0 // pred_region
    _
  $region25: #{tpu_custom_call.1} parent=0 // pred_fallthru
    _
  // Predicated region
  $region26: #{tpu_custom_call.1} parent=0 // pred_check
    _
  $region27: #{tpu_custom_call.1} parent=0 // pred_check_branch
    %31 = sbr.rel (0) target = $region29
  $region28: #{tpu_custom_call.1} parent=0 // pred_region
    _
  $region29: #{tpu_custom_call.1} parent=0 // pred_fallthru
    _
  // Predicated region
  $region30: #{tpu_custom_call.1} parent=0 // pred_check
    _
  $region31: #{tpu_custom_call.1} parent=0 // pred_check_branch
    %33 = sbr.rel (0) target = $region33
  $region32: #{tpu_custom_call.1} parent=0 // pred_region
    _
  $region33: #{tpu_custom_call.1} parent=0 // pred_fallthru
    _
  // Predicated region
  $region34: #{tpu_custom_call.1} parent=0 // pred_check
    _
  $region35: #{tpu_custom_call.1} parent=0 // pred_check_branch
    %35 = sbr.rel (0) target = $region37
  $region36: #{tpu_custom_call.1} parent=0 // pred_region
    _
  $region37: #{tpu_custom_call.1} parent=0 // pred_fallthru
    _
  // Predicated region
  $region38: #{tpu_custom_call.1} parent=0 // pred_check
    _
  $region39: #{tpu_custom_call.1} parent=0 // pred_check_branch
    %37 = sbr.rel (0) target = $region41
  $region40: #{tpu_custom_call.1} parent=0 // pred_region
    _
  $region41: #{tpu_custom_call.1} parent=0 // pred_fallthru
    _
  // Predicated region
  $region42: #{tpu_custom_call.1} parent=0 // pred_check
    _
  $region43: #{tpu_custom_call.1} parent=0 // pred_check_branch
    %39 = sbr.rel (0) target = $region45
  $region44: #{tpu_custom_call.1} parent=0 // pred_region
    _
  $region45: #{tpu_custom_call.1} parent=0 // pred_fallthru
    _
  %v40 = vld [vmem:[%s0] sm:$0xff]
  %v41 = vld [vmem:[%s0 + $0x8] sm:$0xff]
  %v42 = vld [vmem:[%s0 + $0x10] sm:$0xff]
  %v43 = vld [vmem:[%s0 + $0x18] sm:$0xff]
  %v44 = vld [vmem:[%s0 + $0x20] sm:$0xff]
  %v45 = vld [vmem:[%s0 + $0x28] sm:$0xff]
  %v46 = vld [vmem:[%s0 + $0x30] sm:$0xff]
  %v47 = vld [vmem:[%s0 + $0x38] sm:$0xff]
  %v48 = vld [vmem:[%s1] sm:$0x3f]
  %50 = vset.pattern.permute.xlu0 0
  %51 = vperm.xlu0 %50, %v40
  %v52 = vpop.permute.xlu0 %51
  %55 = vset.pattern.permute.xlu0 0
  %56 = vperm.xlu0 %55, %v41
  %v57 = vpop.permute.xlu0 %56
  %60 = vset.pattern.permute.xlu0 0
  %61 = vperm.xlu0 %60, %v42
  %v62 = vpop.permute.xlu0 %61
  %65 = vset.pattern.permute.xlu0 0
  %66 = vperm.xlu0 %65, %v43
  %v67 = vpop.permute.xlu0 %66
  %70 = vset.pattern.permute.xlu0 0
  %71 = vperm.xlu0 %70, %v44
  %v72 = vpop.permute.xlu0 %71
  %75 = vset.pattern.permute.xlu0 0
  %76 = vperm.xlu0 %75, %v45
  %v77 = vpop.permute.xlu0 %76
  %80 = vset.pattern.permute.xlu0 0
  %81 = vperm.xlu0 %80, %v46
  %v82 = vpop.permute.xlu0 %81
  %85 = vset.pattern.permute.xlu0 0
  %86 = vperm.xlu0 %85, %v47
  %v87 = vpop.permute.xlu0 %86
  %v90 = vperm.slane %v48, 0
  %v91 = vperm.slane %v48, 2
  %v92 = vperm.slane %v48, 4
  %v96 = vperm.slane %v90, 0
  %v97 = vperm.slane %v91, 0
  %v98 = vperm.slane %v92, 0
  %v99 = vmul.f32 %v52, %v96
  %v100 = vmul.f32 %v52, %v97
  %v101 = vmul.f32 %v52, %v98
  %v102 = vmul.f32 %v57, %v96
  %v103 = vmul.f32 %v57, %v97
  %v104 = vmul.f32 %v57, %v98
  %v105 = vmul.f32 %v62, %v96
  %v106 = vmul.f32 %v62, %v97
  %v107 = vmul.f32 %v62, %v98
  %v108 = vmul.f32 %v67, %v96
  %v109 = vmul.f32 %v67, %v97
  %v110 = vmul.f32 %v67, %v98
  %v111 = vmul.f32 %v72, %v96
  %v112 = vmul.f32 %v72, %v97
  %v113 = vmul.f32 %v72, %v98
  %v114 = vmul.f32 %v77, %v96
  %v115 = vmul.f32 %v77, %v97
  %v116 = vmul.f32 %v77, %v98
  %v117 = vmul.f32 %v82, %v96
  %v118 = vmul.f32 %v82, %v97
  %v119 = vmul.f32 %v82, %v98
  %v120 = vmul.f32 %v87, %v96
  %v121 = vmul.f32 %v87, %v97
  %v122 = vmul.f32 %v87, %v98
  %123 = vset.pattern.permute.xlu0 1
  %124 = vperm.xlu0 %123, %v40
  %v125 = vpop.permute.xlu0 %124
  %127 = vset.pattern.permute.xlu0 1
  %128 = vperm.xlu0 %127, %v41
  %v129 = vpop.permute.xlu0 %128
  %131 = vset.pattern.permute.xlu0 1
  %132 = vperm.xlu0 %131, %v42
  %v133 = vpop.permute.xlu0 %132
  %135 = vset.pattern.permute.xlu0 1
  %136 = vperm.xlu0 %135, %v43
  %v137 = vpop.permute.xlu0 %136
  %139 = vset.pattern.permute.xlu0 1
  %140 = vperm.xlu0 %139, %v44
  %v141 = vpop.permute.xlu0 %140
  %143 = vset.pattern.permute.xlu0 1
  %144 = vperm.xlu0 %143, %v45
  %v145 = vpop.permute.xlu0 %144
  %147 = vset.pattern.permute.xlu0 1
  %148 = vperm.xlu0 %147, %v46
  %v149 = vpop.permute.xlu0 %148
  %151 = vset.pattern.permute.xlu0 1
  %152 = vperm.xlu0 %151, %v47
  %v153 = vpop.permute.xlu0 %152
  %v155 = vperm.slane %v48, 1
  %v156 = vperm.slane %v48, 3
  %v157 = vperm.slane %v48, 5
  %v161 = vperm.slane %v155, 1
  %v162 = vperm.slane %v156, 1
  %v163 = vperm.slane %v157, 1
  %v164 = vmul.f32 %v125, %v161
  %v165 = vmul.f32 %v125, %v162
  %v166 = vmul.f32 %v125, %v163
  %v167 = vmul.f32 %v129, %v161
  %v168 = vmul.f32 %v129, %v162
  %v169 = vmul.f32 %v129, %v163
  %v170 = vmul.f32 %v133, %v161
  %v171 = vmul.f32 %v133, %v162
  %v172 = vmul.f32 %v133, %v163
  %v173 = vmul.f32 %v137, %v161
  %v174 = vmul.f32 %v137, %v162
  %v175 = vmul.f32 %v137, %v163
  %v176 = vmul.f32 %v141, %v161
  %v177 = vmul.f32 %v141, %v162
  %v178 = vmul.f32 %v141, %v163
  %v179 = vmul.f32 %v145, %v161
  %v180 = vmul.f32 %v145, %v162
  %v181 = vmul.f32 %v145, %v163
  %v182 = vmul.f32 %v149, %v161
  %v183 = vmul.f32 %v149, %v162
  %v184 = vmul.f32 %v149, %v163
  %v185 = vmul.f32 %v153, %v161
  %v186 = vmul.f32 %v153, %v162
  %v187 = vmul.f32 %v153, %v163
  %v188 = vadd.f32 %v99, %v164
  %v189 = vadd.f32 %v100, %v165
  %v190 = vadd.f32 %v101, %v166
  %v191 = vadd.f32 %v102, %v167
  %v192 = vadd.f32 %v103, %v168
  %v193 = vadd.f32 %v104, %v169
  %v194 = vadd.f32 %v105, %v170
  %v195 = vadd.f32 %v106, %v171
  %v196 = vadd.f32 %v107, %v172
  %v197 = vadd.f32 %v108, %v173
  %v198 = vadd.f32 %v109, %v174
  %v199 = vadd.f32 %v110, %v175
  %v200 = vadd.f32 %v111, %v176
  %v201 = vadd.f32 %v112, %v177
  %v202 = vadd.f32 %v113, %v178
  %v203 = vadd.f32 %v114, %v179
  %v204 = vadd.f32 %v115, %v180
  %v205 = vadd.f32 %v116, %v181
  %v206 = vadd.f32 %v117, %v182
  %v207 = vadd.f32 %v118, %v183
  %v208 = vadd.f32 %v119, %v184
  %v209 = vadd.f32 %v120, %v185
  %v210 = vadd.f32 %v121, %v186
  %v211 = vadd.f32 %v122, %v187
  %v212 = vld [vmem:[%s2] sm:$0x7]
  %v214 = vperm.slane %v212, 0
  %v215 = vperm.slane %v212, 1
  %v216 = vperm.slane %v212, 2
  %v220 = vadd.f32 %v188, %v214
  %v221 = vadd.f32 %v189, %v215
  %v222 = vadd.f32 %v190, %v216
  %v223 = vadd.f32 %v191, %v214
  %v224 = vadd.f32 %v192, %v215
  %v225 = vadd.f32 %v193, %v216
  %v226 = vadd.f32 %v194, %v214
  %v227 = vadd.f32 %v195, %v215
  %v228 = vadd.f32 %v196, %v216
  %v229 = vadd.f32 %v197, %v214
  %v230 = vadd.f32 %v198, %v215
  %v231 = vadd.f32 %v199, %v216
  %v232 = vadd.f32 %v200, %v214
  %v233 = vadd.f32 %v201, %v215
  %v234 = vadd.f32 %v202, %v216
  %v235 = vadd.f32 %v203, %v214
  %v236 = vadd.f32 %v204, %v215
  %v237 = vadd.f32 %v205, %v216
  %v238 = vadd.f32 %v206, %v214
  %v239 = vadd.f32 %v207, %v215
  %v240 = vadd.f32 %v208, %v216
  %v241 = vadd.f32 %v209, %v214
  %v242 = vadd.f32 %v210, %v215
  %v243 = vadd.f32 %v211, %v216
  %v244 = vtanh.pop %v220
  %v245 = vtanh.pop %v221
  %v246 = vtanh.pop %v222
  %v247 = vtanh.pop %v223
  %v248 = vtanh.pop %v224
  %v249 = vtanh.pop %v225
  %v250 = vtanh.pop %v226
  %v251 = vtanh.pop %v227
  %v252 = vtanh.pop %v228
  %v253 = vtanh.pop %v229
  %v254 = vtanh.pop %v230
  %v255 = vtanh.pop %v231
  %v256 = vtanh.pop %v232
  %v257 = vtanh.pop %v233
  %v258 = vtanh.pop %v234
  %v259 = vtanh.pop %v235
  %v260 = vtanh.pop %v236
  %v261 = vtanh.pop %v237
  %v262 = vtanh.pop %v238
  %v263 = vtanh.pop %v239
  %v264 = vtanh.pop %v240
  %v265 = vtanh.pop %v241
  %v266 = vtanh.pop %v242
  %v267 = vtanh.pop %v243
  %v268 = vld [vmem:[%s3] sm:$0xff]
  %v269 = vld [vmem:[%s3 + $0x8] sm:$0xff]
  %v270 = vld [vmem:[%s3 + $0x10] sm:$0xff]
  %v271 = vld [vmem:[%s3 + $0x18] sm:$0xff]
  %v272 = vld [vmem:[%s3 + $0x20] sm:$0xff]
  %v273 = vld [vmem:[%s3 + $0x28] sm:$0xff]
  %v274 = vld [vmem:[%s3 + $0x30] sm:$0xff]
  %v275 = vld [vmem:[%s3 + $0x38] sm:$0xff]
  %v276 = vld [vmem:[%s3 + $0x40] sm:$0xff]
  %v277 = vld [vmem:[%s3 + $0x48] sm:$0xff]
  %v278 = vld [vmem:[%s3 + $0x50] sm:$0xff]
  %v279 = vld [vmem:[%s3 + $0x58] sm:$0xff]
  %v280 = vld [vmem:[%s3 + $0x60] sm:$0xff]
  %v281 = vld [vmem:[%s3 + $0x68] sm:$0xff]
  %v282 = vld [vmem:[%s3 + $0x70] sm:$0xff]
  %v283 = vld [vmem:[%s3 + $0x78] sm:$0xff]
  %v284 = vld [vmem:[%s3 + $0x80] sm:$0xff]
  %v285 = vld [vmem:[%s3 + $0x88] sm:$0xff]
  %v286 = vld [vmem:[%s3 + $0x90] sm:$0xff]
  %v287 = vld [vmem:[%s3 + $0x98] sm:$0xff]
  %v288 = vld [vmem:[%s3 + $0xa0] sm:$0xff]
  %v289 = vld [vmem:[%s3 + $0xa8] sm:$0xff]
  %v290 = vld [vmem:[%s3 + $0xb0] sm:$0xff]
  %v291 = vld [vmem:[%s3 + $0xb8] sm:$0xff]
  %v292 = vld [vmem:[%s3 + $0xc0] sm:$0xff]
  %v293 = vld [vmem:[%s3 + $0xc8] sm:$0xff]
  %v294 = vld [vmem:[%s3 + $0xd0] sm:$0xff]
  %v295 = vld [vmem:[%s3 + $0xd8] sm:$0xff]
  %v296 = vld [vmem:[%s3 + $0xe0] sm:$0xff]
  %v297 = vld [vmem:[%s3 + $0xe8] sm:$0xff]
  %v298 = vld [vmem:[%s3 + $0xf0] sm:$0xff]
  %v299 = vld [vmem:[%s3 + $0xf8] sm:$0xff]
  %v300 = vld [vmem:[%s3 + $0x100] sm:$0xff]
  %v301 = vld [vmem:[%s3 + $0x108] sm:$0xff]
  %v302 = vld [vmem:[%s3 + $0x110] sm:$0xff]
  %v303 = vld [vmem:[%s3 + $0x118] sm:$0xff]
  %v304 = vld [vmem:[%s3 + $0x120] sm:$0xff]
  %v305 = vld [vmem:[%s3 + $0x128] sm:$0xff]
  %v306 = vld [vmem:[%s3 + $0x130] sm:$0xff]
  %v307 = vld [vmem:[%s3 + $0x138] sm:$0xff]
  %v308 = vld [vmem:[%s3 + $0x140] sm:$0xff]
  %v309 = vld [vmem:[%s3 + $0x148] sm:$0xff]
  %v310 = vld [vmem:[%s3 + $0x150] sm:$0xff]
  %v311 = vld [vmem:[%s3 + $0x158] sm:$0xff]
  %v312 = vld [vmem:[%s3 + $0x160] sm:$0xff]
  %v313 = vld [vmem:[%s3 + $0x168] sm:$0xff]
  %v314 = vld [vmem:[%s3 + $0x170] sm:$0xff]
  %v315 = vld [vmem:[%s3 + $0x178] sm:$0xff]
  %v316 = vld [vmem:[%s3 + $0x180] sm:$0xff]
  %v317 = vld [vmem:[%s3 + $0x188] sm:$0xff]
  %v318 = vld [vmem:[%s3 + $0x190] sm:$0xff]
  %v319 = vld [vmem:[%s3 + $0x198] sm:$0xff]
  %v320 = vld [vmem:[%s3 + $0x1a0] sm:$0xff]
  %v321 = vld [vmem:[%s3 + $0x1a8] sm:$0xff]
  %v322 = vld [vmem:[%s3 + $0x1b0] sm:$0xff]
  %v323 = vld [vmem:[%s3 + $0x1b8] sm:$0xff]
  %v324 = vld [vmem:[%s3 + $0x1c0] sm:$0xff]
  %v325 = vld [vmem:[%s3 + $0x1c8] sm:$0xff]
  %v326 = vld [vmem:[%s3 + $0x1d0] sm:$0xff]
  %v327 = vld [vmem:[%s3 + $0x1d8] sm:$0xff]
  %v328 = vld [vmem:[%s3 + $0x1e0] sm:$0xff]
  %v329 = vld [vmem:[%s3 + $0x1e8] sm:$0xff]
  %v330 = vld [vmem:[%s3 + $0x1f0] sm:$0xff]
  %v331 = vld [vmem:[%s3 + $0x1f8] sm:$0xff]
  %v332 = vld [vmem:[%s3 + $0x200] sm:$0xff]
  %v333 = vld [vmem:[%s3 + $0x208] sm:$0xff]
  %v334 = vld [vmem:[%s3 + $0x210] sm:$0xff]
  %v335 = vld [vmem:[%s3 + $0x218] sm:$0xff]
  %v336 = vld [vmem:[%s3 + $0x220] sm:$0xff]
  %v337 = vld [vmem:[%s3 + $0x228] sm:$0xff]
  %v338 = vld [vmem:[%s3 + $0x230] sm:$0xff]
  %v339 = vld [vmem:[%s3 + $0x238] sm:$0xff]
  %v340 = vld [vmem:[%s3 + $0x240] sm:$0xff]
  %v341 = vld [vmem:[%s3 + $0x248] sm:$0xff]
  %v342 = vld [vmem:[%s3 + $0x250] sm:$0xf]
  %v343 = vld [vmem:[%s3 + $0x258] sm:$0xf]
  %v344 = vld [vmem:[%s4] sm:$0x3]
  %v346 = vperm.slane %v344, 0
  %v347 = vperm.slane %v344, 1
  %vm350 = vcmask 359424
  %v352 = vsel %vm350, %v246, 0
  %v355 = vsel %vm350, %v249, 0
  %v358 = vsel %vm350, %v252, 0
  %v361 = vsel %vm350, %v255, 0
  %v364 = vsel %vm350, %v258, 0
  %v367 = vsel %vm350, %v261, 0
  %v370 = vsel %vm350, %v264, 0
  %v373 = vsel %vm350, %v267, 0
  %vm375 = vcmask 1043456
  %v377 = vsel %vm375, %v342, 0
  %v380 = vsel %vm375, %v343, 0
  %382 = vmatpush.msra.mxu0 %v298
  %383 = vmatpush.msra.mxu0 %v296
  %384 = vmatpush.msra.mxu0 %v294
  %385 = vmatpush.msra.mxu0 %v292
  %386 = vmatpush.msra.mxu0 %v290
  %387 = vmatpush.msra.mxu0 %v288
  %388 = vmatpush.msra.mxu0 %v286
  %389 = vmatpush.msra.mxu0 %v284
  %390 = vmatpush.msra.mxu0 %v282
  %391 = vmatpush.msra.mxu0 %v280
  %392 = vmatpush.msra.mxu0 %v278
  %393 = vmatpush.msra.mxu0 %v276
  %394 = vmatpush.msra.mxu0 %v274
  %395 = vmatpush.msra.mxu0 %v272
  %396 = vmatpush.msra.mxu0 %v270
  %397 = vmatpush.msra.mxu0 %v268
  %398 = vmatmul.f32.gmra.mxu0 %v244
  %v399 = vpop.f32.mrf.mxu0
  %v400 = vadd.f32 %v346, %v399
  %401 = vmatmul.f32.gmra.mxu0 %v247
  %v402 = vpop.f32.mrf.mxu0
  %v403 = vadd.f32 %v346, %v402
  %404 = vmatmul.f32.gmra.mxu0 %v250
  %v405 = vpop.f32.mrf.mxu0
  %v406 = vadd.f32 %v346, %v405
  %407 = vmatmul.f32.gmra.mxu0 %v253
  %v408 = vpop.f32.mrf.mxu0
  %v409 = vadd.f32 %v346, %v408
  %410 = vmatmul.f32.gmra.mxu0 %v256
  %v411 = vpop.f32.mrf.mxu0
  %v412 = vadd.f32 %v346, %v411
  %413 = vmatmul.f32.gmra.mxu0 %v259
  %v414 = vpop.f32.mrf.mxu0
  %v415 = vadd.f32 %v346, %v414
  %416 = vmatmul.f32.gmra.mxu0 %v262
  %v417 = vpop.f32.mrf.mxu0
  %v418 = vadd.f32 %v346, %v417
  %419 = vmatmul.f32.gmra.mxu0 %v265
  %v420 = vpop.f32.mrf.mxu0
  %v421 = vadd.f32 %v346, %v420
  %422 = vdwg.mxu0
  %423 = vmatpush.msra.mxu0 %v330
  %424 = vmatpush.msra.mxu0 %v328
  %425 = vmatpush.msra.mxu0 %v326
  %426 = vmatpush.msra.mxu0 %v324
  %427 = vmatpush.msra.mxu0 %v322
  %428 = vmatpush.msra.mxu0 %v320
  %429 = vmatpush.msra.mxu0 %v318
  %430 = vmatpush.msra.mxu0 %v316
  %431 = vmatpush.msra.mxu0 %v314
  %432 = vmatpush.msra.mxu0 %v312
  %433 = vmatpush.msra.mxu0 %v310
  %434 = vmatpush.msra.mxu0 %v308
  %435 = vmatpush.msra.mxu0 %v306
  %436 = vmatpush.msra.mxu0 %v304
  %437 = vmatpush.msra.mxu0 %v302
  %438 = vmatpush.msra.mxu0 %v300
  %439 = vmatmul.f32.gmra.mxu0 %v245
  %v440 = vpop.f32.mrf.mxu0
  %v441 = vadd.f32 %v400, %v440
  %442 = vmatmul.f32.gmra.mxu0 %v248
  %v443 = vpop.f32.mrf.mxu0
  %v444 = vadd.f32 %v403, %v443
  %445 = vmatmul.f32.gmra.mxu0 %v251
  %v446 = vpop.f32.mrf.mxu0
  %v447 = vadd.f32 %v406, %v446
  %448 = vmatmul.f32.gmra.mxu0 %v254
  %v449 = vpop.f32.mrf.mxu0
  %v450 = vadd.f32 %v409, %v449
  %451 = vmatmul.f32.gmra.mxu0 %v257
  %v452 = vpop.f32.mrf.mxu0
  %v453 = vadd.f32 %v412, %v452
  %454 = vmatmul.f32.gmra.mxu0 %v260
  %v455 = vpop.f32.mrf.mxu0
  %v456 = vadd.f32 %v415, %v455
  %457 = vmatmul.f32.gmra.mxu0 %v263
  %v458 = vpop.f32.mrf.mxu0
  %v459 = vadd.f32 %v418, %v458
  %460 = vmatmul.f32.gmra.mxu0 %v266
  %v461 = vpop.f32.mrf.mxu0
  %v462 = vadd.f32 %v421, %v461
  %463 = vdwg.mxu0
  %464 = vmatpush.msra.mxu0 0.0
  %465 = vmatpush.msra.mxu0 0.0
  %466 = vmatpush.msra.mxu0 0.0
  %467 = vmatpush.msra.mxu0 0.0
  %468 = vmatpush.msra.mxu0 0.0
  %469 = vmatpush.msra.mxu0 0.0
  %470 = vmatpush.msra.mxu0 0.0
  %471 = vmatpush.msra.mxu0 0.0
  %472 = vmatpush.msra.mxu0 0.0
  %473 = vmatpush.msra.mxu0 0.0
  %474 = vmatpush.msra.mxu0 %v377
  %475 = vmatpush.msra.mxu0 %v340
  %476 = vmatpush.msra.mxu0 %v338
  %477 = vmatpush.msra.mxu0 %v336
  %478 = vmatpush.msra.mxu0 %v334
  %479 = vmatpush.msra.mxu0 %v332
  %480 = vmatmul.f32.gmra.mxu0 %v352
  %v481 = vpop.f32.mrf.mxu0
  %v482 = vadd.f32 %v441, %v481
  %483 = vmatmul.f32.gmra.mxu0 %v355
  %v484 = vpop.f32.mrf.mxu0
  %v485 = vadd.f32 %v444, %v484
  %486 = vmatmul.f32.gmra.mxu0 %v358
  %v487 = vpop.f32.mrf.mxu0
  %v488 = vadd.f32 %v447, %v487
  %489 = vmatmul.f32.gmra.mxu0 %v361
  %v490 = vpop.f32.mrf.mxu0
  %v491 = vadd.f32 %v450, %v490
  %492 = vmatmul.f32.gmra.mxu0 %v364
  %v493 = vpop.f32.mrf.mxu0
  %v494 = vadd.f32 %v453, %v493
  %495 = vmatmul.f32.gmra.mxu0 %v367
  %v496 = vpop.f32.mrf.mxu0
  %v497 = vadd.f32 %v456, %v496
  %498 = vmatmul.f32.gmra.mxu0 %v370
  %v499 = vpop.f32.mrf.mxu0
  %v500 = vadd.f32 %v459, %v499
  %501 = vmatmul.f32.gmra.mxu0 %v373
  %v502 = vpop.f32.mrf.mxu0
  %v503 = vadd.f32 %v462, %v502
  %504 = vdwg.mxu0
  %505 = vmatpush.msra.mxu0 %v299
  %506 = vmatpush.msra.mxu0 %v297
  %507 = vmatpush.msra.mxu0 %v295
  %508 = vmatpush.msra.mxu0 %v293
  %509 = vmatpush.msra.mxu0 %v291
  %510 = vmatpush.msra.mxu0 %v289
  %511 = vmatpush.msra.mxu0 %v287
  %512 = vmatpush.msra.mxu0 %v285
  %513 = vmatpush.msra.mxu0 %v283
  %514 = vmatpush.msra.mxu0 %v281
  %515 = vmatpush.msra.mxu0 %v279
  %516 = vmatpush.msra.mxu0 %v277
  %517 = vmatpush.msra.mxu0 %v275
  %518 = vmatpush.msra.mxu0 %v273
  %519 = vmatpush.msra.mxu0 %v271
  %520 = vmatpush.msra.mxu0 %v269
  %521 = vmatmul.f32.gmra.mxu0 %v244
  %v522 = vpop.f32.mrf.mxu0
  %v523 = vadd.f32 %v347, %v522
  %524 = vmatmul.f32.gmra.mxu0 %v247
  %v525 = vpop.f32.mrf.mxu0
  %v526 = vadd.f32 %v347, %v525
  %527 = vmatmul.f32.gmra.mxu0 %v250
  %v528 = vpop.f32.mrf.mxu0
  %v529 = vadd.f32 %v347, %v528
  %530 = vmatmul.f32.gmra.mxu0 %v253
  %v531 = vpop.f32.mrf.mxu0
  %v532 = vadd.f32 %v347, %v531
  %533 = vmatmul.f32.gmra.mxu0 %v256
  %v534 = vpop.f32.mrf.mxu0
  %v535 = vadd.f32 %v347, %v534
  %536 = vmatmul.f32.gmra.mxu0 %v259
  %v537 = vpop.f32.mrf.mxu0
  %v538 = vadd.f32 %v347, %v537
  %539 = vmatmul.f32.gmra.mxu0 %v262
  %v540 = vpop.f32.mrf.mxu0
  %v541 = vadd.f32 %v347, %v540
  %542 = vmatmul.f32.gmra.mxu0 %v265
  %v543 = vpop.f32.mrf.mxu0
  %v544 = vadd.f32 %v347, %v543
  %545 = vdwg.mxu0
  %546 = vmatpush.msra.mxu0 %v331
  %547 = vmatpush.msra.mxu0 %v329
  %548 = vmatpush.msra.mxu0 %v327
  %549 = vmatpush.msra.mxu0 %v325
  %550 = vmatpush.msra.mxu0 %v323
  %551 = vmatpush.msra.mxu0 %v321
  %552 = vmatpush.msra.mxu0 %v319
  %553 = vmatpush.msra.mxu0 %v317
  %554 = vmatpush.msra.mxu0 %v315
  %555 = vmatpush.msra.mxu0 %v313
  %556 = vmatpush.msra.mxu0 %v311
  %557 = vmatpush.msra.mxu0 %v309
  %558 = vmatpush.msra.mxu0 %v307
  %559 = vmatpush.msra.mxu0 %v305
  %560 = vmatpush.msra.mxu0 %v303
  %561 = vmatpush.msra.mxu0 %v301
  %562 = vmatmul.f32.gmra.mxu0 %v245
  %v563 = vpop.f32.mrf.mxu0
  %v564 = vadd.f32 %v523, %v563
  %565 = vmatmul.f32.gmra.mxu0 %v248
  %v566 = vpop.f32.mrf.mxu0
  %v567 = vadd.f32 %v526, %v566
  %568 = vmatmul.f32.gmra.mxu0 %v251
  %v569 = vpop.f32.mrf.mxu0
  %v570 = vadd.f32 %v529, %v569
  %571 = vmatmul.f32.gmra.mxu0 %v254
  %v572 = vpop.f32.mrf.mxu0
  %v573 = vadd.f32 %v532, %v572
  %574 = vmatmul.f32.gmra.mxu0 %v257
  %v575 = vpop.f32.mrf.mxu0
  %v576 = vadd.f32 %v535, %v575
  %577 = vmatmul.f32.gmra.mxu0 %v260
  %v578 = vpop.f32.mrf.mxu0
  %v579 = vadd.f32 %v538, %v578
  %580 = vmatmul.f32.gmra.mxu0 %v263
  %v581 = vpop.f32.mrf.mxu0
  %v582 = vadd.f32 %v541, %v581
  %583 = vmatmul.f32.gmra.mxu0 %v266
  %v584 = vpop.f32.mrf.mxu0
  %v585 = vadd.f32 %v544, %v584
  %586 = vdwg.mxu0
  %587 = vmatpush.msra.mxu0 0.0
  %588 = vmatpush.msra.mxu0 0.0
  %589 = vmatpush.msra.mxu0 0.0
  %590 = vmatpush.msra.mxu0 0.0
  %591 = vmatpush.msra.mxu0 0.0
  %592 = vmatpush.msra.mxu0 0.0
  %593 = vmatpush.msra.mxu0 0.0
  %594 = vmatpush.msra.mxu0 0.0
  %595 = vmatpush.msra.mxu0 0.0
  %596 = vmatpush.msra.mxu0 0.0
  %597 = vmatpush.msra.mxu0 %v380
  %598 = vmatpush.msra.mxu0 %v341
  %599 = vmatpush.msra.mxu0 %v339
  %600 = vmatpush.msra.mxu0 %v337
  %601 = vmatpush.msra.mxu0 %v335
  %602 = vmatpush.msra.mxu0 %v333
  %603 = vmatmul.f32.gmra.mxu0 %v352
  %v604 = vpop.f32.mrf.mxu0
  %v605 = vadd.f32 %v564, %v604
  %606 = vmatmul.f32.gmra.mxu0 %v355
  %v607 = vpop.f32.mrf.mxu0
  %v608 = vadd.f32 %v567, %v607
  %609 = vmatmul.f32.gmra.mxu0 %v358
  %v610 = vpop.f32.mrf.mxu0
  %v611 = vadd.f32 %v570, %v610
  %612 = vmatmul.f32.gmra.mxu0 %v361
  %v613 = vpop.f32.mrf.mxu0
  %v614 = vadd.f32 %v573, %v613
  %615 = vmatmul.f32.gmra.mxu0 %v364
  %v616 = vpop.f32.mrf.mxu0
  %v617 = vadd.f32 %v576, %v616
  %618 = vmatmul.f32.gmra.mxu0 %v367
  %v619 = vpop.f32.mrf.mxu0
  %v620 = vadd.f32 %v579, %v619
  %621 = vmatmul.f32.gmra.mxu0 %v370
  %v622 = vpop.f32.mrf.mxu0
  %v623 = vadd.f32 %v582, %v622
  %624 = vmatmul.f32.gmra.mxu0 %v373
  %v625 = vpop.f32.mrf.mxu0
  %v626 = vadd.f32 %v585, %v625
  %627 = vdwg.mxu0
  %v628 = vtanh.pop %v482
  %v629 = vtanh.pop %v605
  %v630 = vtanh.pop %v485
  %v631 = vtanh.pop %v608
  %v632 = vtanh.pop %v488
  %v633 = vtanh.pop %v611
  %v634 = vtanh.pop %v491
  %v635 = vtanh.pop %v614
  %v636 = vtanh.pop %v494
  %v637 = vtanh.pop %v617
  %v638 = vtanh.pop %v497
  %v639 = vtanh.pop %v620
  %v640 = vtanh.pop %v500
  %v641 = vtanh.pop %v623
  %v642 = vtanh.pop %v503
  %v643 = vtanh.pop %v626
  %v644 = vld [vmem:[%s5] sm:$0xff]
  %v645 = vld [vmem:[%s5 + $0x8] sm:$0xff]
  %v646 = vld [vmem:[%s5 + $0x10] sm:$0xff]
  %v647 = vld [vmem:[%s5 + $0x18] sm:$0xff]
  %v648 = vld [vmem:[%s5 + $0x20] sm:$0xff]
  %v649 = vld [vmem:[%s5 + $0x28] sm:$0xff]
  %v650 = vld [vmem:[%s5 + $0x30] sm:$0xff]
  %v651 = vld [vmem:[%s5 + $0x38] sm:$0xff]
  %v652 = vld [vmem:[%s5 + $0x40] sm:$0xff]
  %v653 = vld [vmem:[%s5 + $0x48] sm:$0xff]
  %v654 = vld [vmem:[%s5 + $0x50] sm:$0xff]
  %v655 = vld [vmem:[%s5 + $0x58] sm:$0xff]
  %v656 = vld [vmem:[%s5 + $0x60] sm:$0xff]
  %v657 = vld [vmem:[%s5 + $0x68] sm:$0xff]
  %v658 = vld [vmem:[%s5 + $0x70] sm:$0xff]
  %v659 = vld [vmem:[%s5 + $0x78] sm:$0xff]
  %v660 = vld [vmem:[%s5 + $0x80] sm:$0xff]
  %v661 = vld [vmem:[%s5 + $0x88] sm:$0xff]
  %v662 = vld [vmem:[%s5 + $0x90] sm:$0x3f]
  %v663 = vld [vmem:[%s6] sm:$0x1]
  %v665 = vperm.slane %v663, 0
  %vm667 = vcmask 179200
  %v669 = vsel %vm667, %v629, 0
  %v672 = vsel %vm667, %v631, 0
  %v675 = vsel %vm667, %v633, 0
  %v678 = vsel %vm667, %v635, 0
  %v681 = vsel %vm667, %v637, 0
  %v684 = vsel %vm667, %v639, 0
  %v687 = vsel %vm667, %v641, 0
  %v690 = vsel %vm667, %v643, 0
  %vm692 = vcmask 1045504
  %v694 = vsel %vm692, %v662, 0
  %696 = vmatpush.msra.mxu0 %v659
  %697 = vmatpush.msra.mxu0 %v658
  %698 = vmatpush.msra.mxu0 %v657
  %699 = vmatpush.msra.mxu0 %v656
  %700 = vmatpush.msra.mxu0 %v655
  %701 = vmatpush.msra.mxu0 %v654
  %702 = vmatpush.msra.mxu0 %v653
  %703 = vmatpush.msra.mxu0 %v652
  %704 = vmatpush.msra.mxu0 %v651
  %705 = vmatpush.msra.mxu0 %v650
  %706 = vmatpush.msra.mxu0 %v649
  %707 = vmatpush.msra.mxu0 %v648
  %708 = vmatpush.msra.mxu0 %v647
  %709 = vmatpush.msra.mxu0 %v646
  %710 = vmatpush.msra.mxu0 %v645
  %711 = vmatpush.msra.mxu0 %v644
  %712 = vmatmul.f32.gmra.mxu0 %v628
  %v713 = vpop.f32.mrf.mxu0
  %v714 = vadd.f32 %v665, %v713
  %715 = vmatmul.f32.gmra.mxu0 %v630
  %v716 = vpop.f32.mrf.mxu0
  %v717 = vadd.f32 %v665, %v716
  %718 = vmatmul.f32.gmra.mxu0 %v632
  %v719 = vpop.f32.mrf.mxu0
  %v720 = vadd.f32 %v665, %v719
  %721 = vmatmul.f32.gmra.mxu0 %v634
  %v722 = vpop.f32.mrf.mxu0
  %v723 = vadd.f32 %v665, %v722
  %724 = vmatmul.f32.gmra.mxu0 %v636
  %v725 = vpop.f32.mrf.mxu0
  %v726 = vadd.f32 %v665, %v725
  %727 = vmatmul.f32.gmra.mxu0 %v638
  %v728 = vpop.f32.mrf.mxu0
  %v729 = vadd.f32 %v665, %v728
  %730 = vmatmul.f32.gmra.mxu0 %v640
  %v731 = vpop.f32.mrf.mxu0
  %v732 = vadd.f32 %v665, %v731
  %733 = vmatmul.f32.gmra.mxu0 %v642
  %v734 = vpop.f32.mrf.mxu0
  %v735 = vadd.f32 %v665, %v734
  %736 = vdwg.mxu0
  %737 = vmatpush.msra.mxu0 0.0
  %738 = vmatpush.msra.mxu0 0.0
  %739 = vmatpush.msra.mxu0 0.0
  %740 = vmatpush.msra.mxu0 0.0
  %741 = vmatpush.msra.mxu0 0.0
  %742 = vmatpush.msra.mxu0 0.0
  %743 = vmatpush.msra.mxu0 0.0
  %744 = vmatpush.msra.mxu0 0.0
  %745 = vmatpush.msra.mxu0 0.0
  %746 = vmatpush.msra.mxu0 0.0
  %747 = vmatpush.msra.mxu0 0.0
  %748 = vmatpush.msra.mxu0 0.0
  %749 = vmatpush.msra.mxu0 0.0
  %750 = vmatpush.msra.mxu0 %v694
  %751 = vmatpush.msra.mxu0 %v661
  %752 = vmatpush.msra.mxu0 %v660
  %753 = vmatmul.f32.gmra.mxu0 %v669
  %v754 = vpop.f32.mrf.mxu0
  %v755 = vadd.f32 %v714, %v754
  %756 = vmatmul.f32.gmra.mxu0 %v672
  %v757 = vpop.f32.mrf.mxu0
  %v758 = vadd.f32 %v717, %v757
  %759 = vmatmul.f32.gmra.mxu0 %v675
  %v760 = vpop.f32.mrf.mxu0
  %v761 = vadd.f32 %v720, %v760
  %762 = vmatmul.f32.gmra.mxu0 %v678
  %v763 = vpop.f32.mrf.mxu0
  %v764 = vadd.f32 %v723, %v763
  %765 = vmatmul.f32.gmra.mxu0 %v681
  %v766 = vpop.f32.mrf.mxu0
  %v767 = vadd.f32 %v726, %v766
  %768 = vmatmul.f32.gmra.mxu0 %v684
  %v769 = vpop.f32.mrf.mxu0
  %v770 = vadd.f32 %v729, %v769
  %771 = vmatmul.f32.gmra.mxu0 %v687
  %v772 = vpop.f32.mrf.mxu0
  %v773 = vadd.f32 %v732, %v772
  %774 = vmatmul.f32.gmra.mxu0 %v690
  %v775 = vpop.f32.mrf.mxu0
  %v776 = vadd.f32 %v735, %v775
  %777 = vdwg.mxu0
  %v778 = vtanh.pop %v755
  %v779 = vtanh.pop %v758
  %v780 = vtanh.pop %v761
  %v781 = vtanh.pop %v764
  %v782 = vtanh.pop %v767
  %v783 = vtanh.pop %v770
  %v784 = vtanh.pop %v773
  %v785 = vtanh.pop %v776
  %v786 = vld [vmem:[%s7] sm:$0xff]
  %v787 = vld [vmem:[%s7 + $0x8] sm:$0xff]
  %v788 = vld [vmem:[%s7 + $0x10] sm:$0xff]
  %v789 = vld [vmem:[%s7 + $0x18] sm:$0xff]
  %v790 = vld [vmem:[%s7 + $0x20] sm:$0xff]
  %v791 = vld [vmem:[%s7 + $0x28] sm:$0xff]
  %v792 = vld [vmem:[%s7 + $0x30] sm:$0xff]
  %v793 = vld [vmem:[%s7 + $0x38] sm:$0xff]
  %v794 = vld [vmem:[%s7 + $0x40] sm:$0xff]
  %v795 = vld [vmem:[%s7 + $0x48] sm:$0x7]
  %v796 = vld [vmem:[%s8] sm:$0x1]
  %v798 = vperm.slane %v796, 0
  %vm800 = vcmask 613376
  %v802 = vsel %vm800, %v778, 0
  %v805 = vsel %vm800, %v779, 0
  %v808 = vsel %vm800, %v780, 0
  %v811 = vsel %vm800, %v781, 0
  %v814 = vsel %vm800, %v782, 0
  %v817 = vsel %vm800, %v783, 0
  %v820 = vsel %vm800, %v784, 0
  %v823 = vsel %vm800, %v785, 0
  %vm825 = vcmask 1042432
  %v827 = vsel %vm825, %v795, 0
  %829 = vmatpush.msra.mxu0 0.0
  %830 = vmatpush.msra.mxu0 0.0
  %831 = vmatpush.msra.mxu0 0.0
  %832 = vmatpush.msra.mxu0 0.0
  %833 = vmatpush.msra.mxu0 0.0
  %834 = vmatpush.msra.mxu0 0.0
  %835 = vmatpush.msra.mxu0 %v827
  %836 = vmatpush.msra.mxu0 %v794
  %837 = vmatpush.msra.mxu0 %v793
  %838 = vmatpush.msra.mxu0 %v792
  %839 = vmatpush.msra.mxu0 %v791
  %840 = vmatpush.msra.mxu0 %v790
  %841 = vmatpush.msra.mxu0 %v789
  %842 = vmatpush.msra.mxu0 %v788
  %843 = vmatpush.msra.mxu0 %v787
  %844 = vmatpush.msra.mxu0 %v786
  %845 = vmatmul.f32.gmra.mxu0 %v802
  %v846 = vpop.f32.mrf.mxu0
  %v847 = vadd.f32 %v798, %v846
  %848 = vmatmul.f32.gmra.mxu0 %v805
  %v849 = vpop.f32.mrf.mxu0
  %v850 = vadd.f32 %v798, %v849
  %851 = vmatmul.f32.gmra.mxu0 %v808
  %v852 = vpop.f32.mrf.mxu0
  %v853 = vadd.f32 %v798, %v852
  %854 = vmatmul.f32.gmra.mxu0 %v811
  %v855 = vpop.f32.mrf.mxu0
  %v856 = vadd.f32 %v798, %v855
  %857 = vmatmul.f32.gmra.mxu0 %v814
  %v858 = vpop.f32.mrf.mxu0
  %v859 = vadd.f32 %v798, %v858
  %860 = vmatmul.f32.gmra.mxu0 %v817
  %v861 = vpop.f32.mrf.mxu0
  %v862 = vadd.f32 %v798, %v861
  %863 = vmatmul.f32.gmra.mxu0 %v820
  %v864 = vpop.f32.mrf.mxu0
  %v865 = vadd.f32 %v798, %v864
  %866 = vmatmul.f32.gmra.mxu0 %v823
  %v867 = vpop.f32.mrf.mxu0
  %v868 = vadd.f32 %v798, %v867
  %869 = vdwg.mxu0
  %v870 = vtanh.pop %v847
  %v871 = vtanh.pop %v850
  %v872 = vtanh.pop %v853
  %v873 = vtanh.pop %v856
  %v874 = vtanh.pop %v859
  %v875 = vtanh.pop %v862
  %v876 = vtanh.pop %v865
  %v877 = vtanh.pop %v868
  %v878 = vld [vmem:[%s9] sm:$0x1]
  %v880 = vperm.slane %v878, 0
  %v882 = vmul.f32 %v870, %v880
  %v883 = vmul.f32 %v871, %v880
  %v884 = vmul.f32 %v872, %v880
  %v885 = vmul.f32 %v873, %v880
  %v886 = vmul.f32 %v874, %v880
  %v887 = vmul.f32 %v875, %v880
  %v888 = vmul.f32 %v876, %v880
  %v889 = vmul.f32 %v877, %v880
  %vm890 = vcmask 244736
  %v891 = vsel %vm890, %v882, 0.0
  %892 = vadd.xlane.f32.xlu0 %v891
  %v893 = vpop.xlane.xlu0 %892
  %v894 = vsel %vm890, %v883, 0.0
  %895 = vadd.xlane.f32.xlu0 %v894
  %v896 = vpop.xlane.xlu0 %895
  %v897 = vsel %vm890, %v884, 0.0
  %898 = vadd.xlane.f32.xlu0 %v897
  %v899 = vpop.xlane.xlu0 %898
  %v900 = vsel %vm890, %v885, 0.0
  %901 = vadd.xlane.f32.xlu0 %v900
  %v902 = vpop.xlane.xlu0 %901
  %v903 = vsel %vm890, %v886, 0.0
  %904 = vadd.xlane.f32.xlu0 %v903
  %v905 = vpop.xlane.xlu0 %904
  %v906 = vsel %vm890, %v887, 0.0
  %907 = vadd.xlane.f32.xlu0 %v906
  %v908 = vpop.xlane.xlu0 %907
  %v909 = vsel %vm890, %v888, 0.0
  %910 = vadd.xlane.f32.xlu0 %v909
  %v911 = vpop.xlane.xlu0 %910
  %v912 = vsel %vm890, %v889, 0.0
  %913 = vadd.xlane.f32.xlu0 %v912
  %v914 = vpop.xlane.xlu0 %913
  %v915 = vld [vmem:[#allocation2] sm:$0x1]
  %v917 = vperm.slane %v915, 0
  %v919 = vadd.f32 %v893, %v917
  %v920 = vadd.f32 %v896, %v917
  %v921 = vadd.f32 %v899, %v917
  %v922 = vadd.f32 %v902, %v917
  %v923 = vadd.f32 %v905, %v917
  %v924 = vadd.f32 %v908, %v917
  %v925 = vadd.f32 %v911, %v917
  %v926 = vadd.f32 %v914, %v917
  %vm927 = vcmask 7168
  %928 = vst.msk [vmem:[%s11] sm:$0xff] %vm927, %v919
  %929 = vst.msk [vmem:[%s11 + $0x8] sm:$0xff] %vm927, %v920
  %930 = vst.msk [vmem:[%s11 + $0x10] sm:$0xff] %vm927, %v921
  %931 = vst.msk [vmem:[%s11 + $0x18] sm:$0xff] %vm927, %v922
  %932 = vst.msk [vmem:[%s11 + $0x20] sm:$0xff] %vm927, %v923
  %933 = vst.msk [vmem:[%s11 + $0x28] sm:$0xff] %vm927, %v924
  %934 = vst.msk [vmem:[%s11 + $0x30] sm:$0xff] %vm927, %v925
  %935 = vst.msk [vmem:[%s11 + $0x38] sm:$0xff] %vm927, %v926
  // Predicated region
  $region46: #{tpu_custom_call.1} parent=0 // pred_check
    _
  $region47: #{tpu_custom_call.1} parent=0 // pred_check_branch
    %937 = sbr.rel (0) target = $region49
  $region48: #{tpu_custom_call.1} parent=0 // pred_region
    _
  $region49: #{tpu_custom_call.1} parent=0 // pred_fallthru
    _
  // Predicated region
  $region50: #{tpu_custom_call.1} parent=0 // pred_check
    _
  $region51: #{tpu_custom_call.1} parent=0 // pred_check_branch
    %939 = sbr.rel (0) target = $region53
  $region52: #{tpu_custom_call.1} parent=0 // pred_region
    _
  $region53: #{tpu_custom_call.1} parent=0 // pred_fallthru
    _

</llo_original>
